<compile_context>
chip_gen: v7x
topology: tpu7x:2x2x1
jax: 0.10.0
libtpu: 0.0.40
codegen_flags: <defaults>
</compile_context>

<pallas_src>
import functools

import jax
import jax.numpy as jnp
from jax.experimental import pallas as pl
from jax.experimental.pallas import tpu as pltpu


def _rope_kernel(x_ref, cos_ref, sin_ref, o_ref, *, head_reps):
    """One (1, tt, M) tile of the rotary embedding, M = n_heads * d_model.

    x_ref, o_ref : (1, tt, M)     activations
    cos_ref      : (tt, W)        cos(angle) interleaved  c0 c0 c1 c1 ...
    sin_ref      : (tt, W)        signed sin interleaved -s0 +s0 -s1 +s1 ...
    W = d_model when head_reps > 1 (replicated in-kernel), else W = M.
    """
    x = x_ref[0].astype(jnp.float32)                       # (tt, M)
    M = x.shape[-1]

    cos = cos_ref[...].astype(jnp.float32)
    sin = sin_ref[...].astype(jnp.float32)
    if head_reps > 1:
        # Aligned lane replication across heads (d_model % 128 == 0): pure
        # vreg duplication, no XLU relayout, and H x less table DMA.
        cos = jnp.concatenate([cos] * head_reps, axis=-1)
        sin = jnp.concatenate([sin] * head_reps, axis=-1)

    # Pair partner of each lane. Even lanes need x[j+1], odd lanes need
    # x[j-1]; the parity select below always picks the in-pair neighbour, so
    # the wrapped element of each rotation is never used.
    if M % 128 == 0:
        x_next = pltpu.roll(x, shift=M - 1, axis=1)        # x_next[:, j] = x[:, j+1]
        x_prev = pltpu.roll(x, shift=1, axis=1)            # x_prev[:, j] = x[:, j-1]
    else:
        x_next = jnp.concatenate([x[:, 1:], x[:, :1]], axis=-1)
        x_prev = jnp.concatenate([x[:, -1:], x[:, :-1]], axis=-1)

    lane = jax.lax.broadcasted_iota(jnp.int32, x.shape, 1)
    partner = jnp.where(lane % 2 == 0, x_next, x_prev)

    o_ref[0] = (x * cos + partner * sin).astype(o_ref.dtype)


def _num_tensorcores() -> int:
    """2 TensorCores per chip on v7x, 1 on v5e/v6e."""
    try:
        kind = jax.devices()[0].device_kind.lower()
    except Exception:  # pragma: no cover
        return 1
    return 2 if ("v7" in kind or "tpu7" in kind) else 1


def _pick_row_tile(n_rows: int, per_row_bytes: int, *, sublane: int,
                   budget_bytes: int, min_row_tiles: int = 1) -> int:
    """Largest legal T-tile whose total per-step footprint fits the budget.

    Legal tiles are multiples of 8 that divide n_rows, or the full axis.
    Prefers multiples of `sublane` (packed-row multiple of the dtype).
    If min_row_tiles > 1 (v7x), shrinks the tile so the grid has enough steps.
    """
    cands = {n_rows}
    t = 8
    while t < n_rows:
        if n_rows % t == 0:
            cands.add(t)
        t += 8
    cands = sorted(cands)

    budget_rows = max(1, budget_bytes // max(per_row_bytes, 1))
    fitting = [c for c in cands if c <= budget_rows]
    if not fitting:
        tt = cands[0]                       # smallest legal tile (clamped fallback)
    else:
        pref = [c for c in fitting if c % sublane == 0 or c == n_rows]
        tt = max(pref) if pref else max(fitting)

    while min_row_tiles > 1 and n_rows // tt < min_row_tiles:
        smaller = [c for c in cands if c < tt]
        if not smaller:
            break
        tt = max(smaller)
    return tt


def init_pos_embedding(seq_len: int, d_model: int, n_heads: int,
                       dtype=jnp.float32):
    """Precompute rotation tables (the torch module's __init__ equivalent).

    Pass dtype=jnp.bfloat16 for bf16 activations to halve table bandwidth.
    """
    if d_model % 2:
        raise ValueError("d_model must be even")
    half = d_model // 2
    k = jnp.arange(half, dtype=jnp.float32)
    theta = jnp.power(jnp.float32(10000.0), -2.0 * k / jnp.float32(d_model))
    m = jnp.arange(seq_len, dtype=jnp.float32)
    angle = jnp.outer(m, theta)                            # (seq_len, d_model//2)
    cos, sin = jnp.cos(angle), jnp.sin(angle)

    def interleave(a, b):                                  # -> (seq_len, d_model)
        return jnp.stack([a, b], axis=-1).reshape(seq_len, d_model)

    cos_t = interleave(cos, cos)       #  c0  c0  c1  c1 ...
    sin_t = interleave(-sin, sin)      # -s0 +s0 -s1 +s1 ...  (merged, signed)

    # Replicate across heads on the host only when in-kernel lane replication
    # would not be tile-aligned (d_model not a multiple of 128).
    head_reps = n_heads if (d_model % 128 == 0) else 1
    if head_reps == 1 and n_heads > 1:
        cos_t = jnp.tile(cos_t, (1, n_heads))
        sin_t = jnp.tile(sin_t, (1, n_heads))

    return {
        "cos": cos_t.astype(dtype),
        "sin": sin_t.astype(dtype),
        "head_reps": head_reps,
        "seq_len": seq_len,
        "d_model": d_model,
        "n_heads": n_heads,
    }


def pos_embedding(x, params):
    """Apply the precomputed rotary embedding; x: (B, T, n_heads, d_model)."""
    B, T, H, C = x.shape
    if C != params["d_model"] or H != params["n_heads"]:
        raise ValueError("x does not match the precomputed tables")
    if T > params["seq_len"]:
        raise ValueError("sequence longer than the tables were built for")

    M = H * C
    x3 = x.reshape(B, T, M)                 # trailing-dim merge: no data movement
    cos_t = params["cos"][:T]               # torch: matrix[:, :T]
    sin_t = params["sin"][:T]
    head_reps = params["head_reps"]
    tbl_w = cos_t.shape[-1]                 # C (de-replicated) or M

    x_item = jnp.dtype(x.dtype).itemsize
    t_item = jnp.dtype(cos_t.dtype).itemsize
    sublane = {4: 8, 2: 16, 1: 32}.get(x_item, 8)

    # Total per-row-of-tile VMEM footprint: double-buffered x in/out blocks,
    # double-buffered cos/sin blocks, plus in-kernel f32 temporaries
    # (upcast x, two rotations, partner, replicated tables, result).
    per_row = (2 * 2 * M * x_item            # x in + out, 2 buffers each
               + 2 * 2 * tbl_w * t_item      # cos + sin, 2 buffers each
               + 6 * M * 4)                  # in-kernel f32 temporaries

    num_tc = _num_tensorcores()
    budget = (16 << 20) if num_tc == 2 else (24 << 20)       # v7x: 64 MiB VMEM/TC
    min_total_steps = 8 if num_tc == 2 else 1
    min_row_tiles = -(-min_total_steps // B)                  # ceil
    tt = _pick_row_tile(T, per_row, sublane=sublane, budget_bytes=budget,
                        min_row_tiles=min_row_tiles)
    grid = (T // tt, B)                      # t outer, b inner: tables stay resident

    footprint = tt * per_row
    vmem_cap = (48 << 20) if num_tc == 2 else (100 << 20)
    vmem_limit = int(min(vmem_cap, max(16 << 20, footprint + (4 << 20))))

    cost = pl.CostEstimate(
        flops=4 * B * T * M,                                  # 2 mul + add + select
        transcendentals=0,
        bytes_accessed=2 * B * T * M * x_item + 2 * T * tbl_w * t_item,
    )

    x_spec = pl.BlockSpec((1, tt, M), lambda t, b: (b, t, 0))
    tbl_spec = pl.BlockSpec((tt, tbl_w), lambda t, b: (t, 0))

    out3 = pl.pallas_call(
        functools.partial(_rope_kernel, head_reps=head_reps),
        out_shape=jax.ShapeDtypeStruct((B, T, M), x.dtype),
        grid_spec=pltpu.PrefetchScalarGridSpec(
            num_scalar_prefetch=0,
            grid=grid,
            in_specs=[x_spec, tbl_spec, tbl_spec],
            out_specs=x_spec,
        ),
        compiler_params=pltpu.CompilerParams(
            dimension_semantics=("parallel", "parallel"),
            vmem_limit_bytes=vmem_limit,
        ),
        cost_estimate=cost,
    )(x3, cos_t, sin_t)

    return out3.reshape(B, T, H, C)


def pos_embedding_ref(x, seq_len, d_model):
    """Pure-JAX mirror of PosEmbedding.forward (complex pair rotation)."""
    B, T, H, C = x.shape
    half = d_model // 2
    k = jnp.arange(half, dtype=jnp.float32)
    theta = jnp.power(jnp.float32(10000.0), -2.0 * k / jnp.float32(d_model))
    m = jnp.arange(seq_len, dtype=jnp.float32)
    angle = jnp.outer(m, theta)[:T]                        # (T, half)
    cos = jnp.cos(angle)[None, :, None, :]
    sin = jnp.sin(angle)[None, :, None, :]
    xp = x.reshape(B, T, H, half, 2)
    xr, xi = xp[..., 0], xp[..., 1]
    o_r = xr * cos - xi * sin
    o_i = xr * sin + xi * cos
    return jnp.stack([o_r, o_i], axis=-1).reshape(B, T, H, C)


if __name__ == "__main__":
    key = jax.random.PRNGKey(0)
    batch, seq, heads, d_model, max_seq_len = 2, 8, 4, 128, 16

    x = jax.random.normal(key, (batch, seq, heads, d_model), jnp.float32)
    params = init_pos_embedding(max_seq_len, d_model, heads, dtype=x.dtype)

    out = jax.block_until_ready(pos_embedding(x, params))

    ref = pos_embedding_ref(x, max_seq_len, d_model)
    assert out.shape == (batch, seq, heads, d_model)
    max_err = float(jnp.max(jnp.abs(out - ref)))
    assert jnp.allclose(out, ref, atol=1e-5, rtol=1e-5), max_err

    print("KERNEL_OK")
</pallas_src>

<mosaic_0001>
module attributes {stable_mosaic.version = 11 : i64} {
  func.func @_rope_kernel(%arg0: i32, %arg1: i32, %arg2: memref<1x8x512xf32, #tpu.memory_space<vmem>>, %arg3: memref<8x128xf32, #tpu.memory_space<vmem>>, %arg4: memref<8x128xf32, #tpu.memory_space<vmem>>, %arg5: memref<1x8x512xf32, #tpu.memory_space<vmem>>) attributes {dimension_semantics = [#tpu.dimension_semantics<parallel>, #tpu.dimension_semantics<parallel>], iteration_bounds = array<i64: 1, 2>, scalar_prefetch = 0 : i64, scratch_operands = 0 : i64, tpu.core_type = #tpu.core_type<tc>, window_params = [{transform_indices = @transform_0, window_bounds = array<i64: 1, 8, 512>}, {transform_indices = @transform_1, window_bounds = array<i64: 8, 128>}, {transform_indices = @transform_2, window_bounds = array<i64: 8, 128>}, {transform_indices = @transform_3, window_bounds = array<i64: 1, 8, 512>}]} {
    %c0 = arith.constant 0 : index
    %c0_0 = arith.constant 0 : index
    %c0_1 = arith.constant 0 : index
    %0 = vector.load %arg2[%c0, %c0_0, %c0_1] : memref<1x8x512xf32, #tpu.memory_space<vmem>>, vector<1x8x512xf32>
    %1 = vector.shape_cast %0 : vector<1x8x512xf32> to vector<8x512xf32>
    %c0_2 = arith.constant 0 : index
    %c0_3 = arith.constant 0 : index
    %2 = vector.load %arg3[%c0_2, %c0_3] : memref<8x128xf32, #tpu.memory_space<vmem>>, vector<8x128xf32>
    %c0_4 = arith.constant 0 : index
    %c0_5 = arith.constant 0 : index
    %3 = vector.load %arg4[%c0_4, %c0_5] : memref<8x128xf32, #tpu.memory_space<vmem>>, vector<8x128xf32>
    %4 = tpu.concatenate %2, %2, %2, %2 in 1 : vector<8x128xf32>, vector<8x128xf32>, vector<8x128xf32>, vector<8x128xf32> -> vector<8x512xf32>
    %5 = tpu.concatenate %3, %3, %3, %3 in 1 : vector<8x128xf32>, vector<8x128xf32>, vector<8x128xf32>, vector<8x128xf32> -> vector<8x512xf32>
    %c511_i32 = arith.constant 511 : i32
    %6 = tpu.dynamic_rotate %1 by %c511_i32 dim 1 : vector<8x512xf32>, i32 -> vector<8x512xf32>
    %c1_i32 = arith.constant 1 : i32
    %7 = tpu.dynamic_rotate %1 by %c1_i32 dim 1 : vector<8x512xf32>, i32 -> vector<8x512xf32>
    %8 = tpu.iota {dimensions = array<i32: 1>} : vector<8x512xi32>
    %c2_i32 = arith.constant 2 : i32
    %c0_i32 = arith.constant 0 : i32
    %9 = arith.cmpi eq, %c2_i32, %c0_i32 : i32
    %c1_i32_6 = arith.constant 1 : i32
    %10 = arith.select %9, %c1_i32_6, %c2_i32 : i32
    %11 = vector.broadcast %10 : i32 to vector<8x512xi32>
    %12 = arith.remsi %8, %11 : vector<8x512xi32>
    %c0_i32_7 = arith.constant 0 : i32
    %13 = vector.broadcast %c0_i32_7 : i32 to vector<8x512xi32>
    %14 = arith.cmpi ne, %12, %13 : vector<8x512xi32>
    %c0_i32_8 = arith.constant 0 : i32
    %15 = vector.broadcast %c0_i32_8 : i32 to vector<8x512xi32>
    %16 = arith.cmpi slt, %12, %15 : vector<8x512xi32>
    %c0_i32_9 = arith.constant 0 : i32
    %17 = arith.cmpi slt, %10, %c0_i32_9 : i32
    %18 = vector.broadcast %17 : i1 to vector<8x512xi1>
    %19 = vector.broadcast %18 : vector<8x512xi1> to vector<8x512xi1>
    %20 = arith.xori %16, %19 : vector<8x512xi1>
    %21 = arith.andi %20, %14 : vector<8x512xi1>
    %22 = vector.broadcast %10 : i32 to vector<8x512xi32>
    %23 = arith.addi %12, %22 : vector<8x512xi32>
    %24 = arith.select %21, %23, %12 : vector<8x512xi1>, vector<8x512xi32>
    %c0_i32_10 = arith.constant 0 : i32
    %25 = vector.broadcast %c0_i32_10 : i32 to vector<8x512xi32>
    %26 = arith.cmpi eq, %24, %25 : vector<8x512xi32>
    %27 = arith.select %26, %6, %7 : vector<8x512xi1>, vector<8x512xf32>
    %28 = arith.mulf %1, %4 : vector<8x512xf32>
    %29 = arith.mulf %27, %5 : vector<8x512xf32>
    %30 = arith.addf %28, %29 : vector<8x512xf32>
    %c0_11 = arith.constant 0 : index
    %c0_12 = arith.constant 0 : index
    %c0_13 = arith.constant 0 : index
    %31 = vector.load %arg5[%c0_11, %c0_12, %c0_13] : memref<1x8x512xf32, #tpu.memory_space<vmem>>, vector<1x8x512xf32>
    %32 = vector.shape_cast %31 : vector<1x8x512xf32> to vector<8x512xf32>
    %33 = vector.shape_cast %30 : vector<8x512xf32> to vector<1x8x512xf32>
    tpu.vector_store %arg5[%c0_11, %c0_12, %c0_13], %33 {strides = array<i32>} : memref<1x8x512xf32, #tpu.memory_space<vmem>>, vector<1x8x512xf32>,
    return
  }
  func.func @transform_0(%arg0: i32, %arg1: i32) -> (i32, i32, i32) {
    %c0_i32 = arith.constant 0 : i32
    %c0_i32_0 = arith.constant 0 : i32
    return %arg1, %arg0, %c0_i32 : i32, i32, i32
  }
  func.func @transform_1(%arg0: i32, %arg1: i32) -> (i32, i32) {
    %c0_i32 = arith.constant 0 : i32
    %c0_i32_0 = arith.constant 0 : i32
    return %arg0, %c0_i32 : i32, i32
  }
  func.func @transform_2(%arg0: i32, %arg1: i32) -> (i32, i32) {
    %c0_i32 = arith.constant 0 : i32
    %c0_i32_0 = arith.constant 0 : i32
    return %arg0, %c0_i32 : i32, i32
  }
  func.func @transform_3(%arg0: i32, %arg1: i32) -> (i32, i32, i32) {
    %c0_i32 = arith.constant 0 : i32
    %c0_i32_0 = arith.constant 0 : i32
    return %arg1, %arg0, %c0_i32 : i32, i32, i32
  }
}

</mosaic_0001>

<llo_original>
// kernel: tpu_custom_call.1
$region0: #{tpu_custom_call.1}
  #allocation0 [shape = 'u32[]', space=smem, size = 0x4, offset = 0x4, fixed_abs, tag = 'smem constant byte address 0x4 - core index']
  #allocation1 [shape = 'u32[144,128]{1,0:T(1,128)}', space=vmem, size = 0x12000, scoped, tag = 'internal scratch']
  %s0 = inlined_call_operand.hbm [shape: f32[2,8,512], index: 0, kind: input, shape index: {}]
  %s1 = inlined_call_operand.hbm [shape: f32[8,128], index: 1, kind: input, shape index: {}]
  %s2 = inlined_call_operand.hbm [shape: f32[8,128], index: 2, kind: input, shape index: {}]
  %s3 = inlined_call_operand.hbm [shape: f32[2,8,512], index: 3, kind: output, shape index: {}]
  %s4 = sld [smem:[#allocation0]]
  $region57: #{tpu_custom_call.1} parent=0
    _
  %s6 = ssub.s32 1, %s4
  %s7 = scalar_select 0, %s6, %s4
  $region1: #{tpu_custom_call.1} parent=0
    #allocation2 [shape = 'u8[32768]{0}', space=vmem, size = 0x8000, scoped, tag = 'input window, operand 0']
    #allocation3 [shape = 's32[2]{0}', space=sflag, size = 0x8, scoped, tag = 'scoped memory for tpu_custom_call.1']
    #allocation4 [shape = 's32[2]{0}', space=sflag, size = 0x8, scoped, tag = 'scoped memory for tpu_custom_call.1']
    #allocation5 [shape = 'u8[4096]{0}', space=vmem, size = 0x1000, scoped, tag = 'input window, operand 1, single buffered']
    #allocation6 [shape = 's32[1]{0}', space=sflag, size = 0x4, scoped, tag = 'scoped memory for tpu_custom_call.1']
    #allocation7 [shape = 'u8[4096]{0}', space=vmem, size = 0x1000, scoped, tag = 'input window, operand 2, single buffered']
    #allocation8 [shape = 'u8[32768]{0}', space=vmem, size = 0x8000, scoped, tag = 'output window, operand 0']
    %8 = vsyncpa [#allocation3], 0
    %s9 = scalar_lea.sflag [#allocation3], 1
    %10 = vsyncpa %s9, 0
    %11 = vsyncpa [#allocation6], 0
    %12 = vsyncpa [#allocation4], 0
    %s13 = scalar_lea.sflag [#allocation4], 1
    %14 = vsyncpa %s13, 0
    loop: start=0, step=1, limit=4
    $region2: #{tpu_custom_call.1} parent=1 // loop_pre_header
      _
    $region3: #{tpu_custom_call.1} parent=1 // loop_header
      %s16 = sphi 0, %s20
      %p17 = scmp.ge.s32.totalorder %s16, 4
      %s23 = sphi 0, %s35
      %s24 = sphi 0, %s31
      %s25 = sphi 0, %s23
      %s26 = sphi 0, %s24
      %s27 = sphi 0, %s25
      %s28 = sphi 0, %s26
      %s40 = sphi 0, %s42
      %s43 = sphi 0, %s40
      %s44 = sphi 0, %s43
      %s60 = sphi 0, %s44
      %s66 = sphi 0, %s68
      %s69 = sphi 0, %s66
      %s70 = sphi 0, %s69
      %s86 = sphi 0, %s70
      %s92 = sphi 0, %s94
      %s95 = sphi 0, %s92
      %s96 = sphi 0, %s95
      %s112 = sphi 0, %s96
      %s120 = sphi 0, %s122
      %s123 = sphi 0, %s120
      %s124 = sphi 0, %s123
      %s140 = sphi 0, %s124
    $region4: #{tpu_custom_call.1} parent=1 // loop_header_branch
      %19 = sbr.rel (%p17) target = $region8
    $region5: #{tpu_custom_call.1} parent=1 // loop_body
      %s21 = ssub.s32 %s16, 1
      %s22 = ssub.s32 %s16, 2
      %s29 = sadd.s32 1, %s24
      %p30 = scmp.ge.s32.totalorder %s29, 2
      %s31 = scalar_select %p30, 0, %s29
      %s32 = sadd.s32 1, %s23
      %s33 = scalar_select %p30, %s32, %s23
      %p34 = scmp.ge.s32.totalorder %s33, 1
      %s35 = scalar_select %p34, 0, %s33
      %s36 = ssub.s32 %s24, %s31
      %s37 = ssub.s32 %s23, %s35
      %s38 = sor.u32 %s36, %s37
      %p39 = scmp.eq.s32.totalorder %s38, 0
      %s41 = sadd.s32 %s40, 1
      %s42 = scalar_select %p39, %s40, %s41
      %p45 = pneg %p39
      %p46 = scmp.eq.s32.totalorder %s16, 1
      %p47 = por %p45, %p46
      %p48 = scmp.ne.s32.totalorder %s40, %s43
      %p49 = scmp.eq.s32.totalorder %s16, 0
      %p50 = por %p48, %p49
      %p51 = scmp.ne.s32.totalorder %s40, %s43
      %p52 = scmp.eq.s32.totalorder %s21, 1
      %p53 = por %p51, %p52
      %p54 = scmp.ne.s32.totalorder %s43, %s44
      %p55 = scmp.eq.s32.totalorder %s21, 0
      %p56 = por %p54, %p55
      %p57 = scmp.ne.s32.totalorder %s43, %s44
      %p58 = scmp.eq.s32.totalorder %s22, 1
      %p59 = por %p57, %p58
      %p61 = scmp.ne.s32.totalorder %s44, %s60
      %p62 = scmp.eq.s32.totalorder %s22, 0
      %p63 = por %p61, %p62
      %s64 = ssub.s32 %s23, %s35
      %p65 = scmp.eq.s32.totalorder %s64, 0
      %s67 = sadd.s32 %s66, 1
      %s68 = scalar_select %p65, %s66, %s67
      %p71 = pneg %p65
      %p72 = scmp.eq.s32.totalorder %s16, 1
      %p73 = por %p71, %p72
      %p74 = scmp.ne.s32.totalorder %s66, %s69
      %p75 = scmp.eq.s32.totalorder %s16, 0
      %p76 = por %p74, %p75
      %p77 = scmp.ne.s32.totalorder %s66, %s69
      %p78 = scmp.eq.s32.totalorder %s21, 1
      %p79 = por %p77, %p78
      %p80 = scmp.ne.s32.totalorder %s69, %s70
      %p81 = scmp.eq.s32.totalorder %s21, 0
      %p82 = por %p80, %p81
      %p83 = scmp.ne.s32.totalorder %s69, %s70
      %p84 = scmp.eq.s32.totalorder %s22, 1
      %p85 = por %p83, %p84
      %p87 = scmp.ne.s32.totalorder %s70, %s86
      %p88 = scmp.eq.s32.totalorder %s22, 0
      %p89 = por %p87, %p88
      %s90 = ssub.s32 %s23, %s35
      %p91 = scmp.eq.s32.totalorder %s90, 0
      %s93 = sadd.s32 %s92, 1
      %s94 = scalar_select %p91, %s92, %s93
      %p97 = pneg %p91
      %p98 = scmp.eq.s32.totalorder %s16, 1
      %p99 = por %p97, %p98
      %p100 = scmp.ne.s32.totalorder %s92, %s95
      %p101 = scmp.eq.s32.totalorder %s16, 0
      %p102 = por %p100, %p101
      %p103 = scmp.ne.s32.totalorder %s92, %s95
      %p104 = scmp.eq.s32.totalorder %s21, 1
      %p105 = por %p103, %p104
      %p106 = scmp.ne.s32.totalorder %s95, %s96
      %p107 = scmp.eq.s32.totalorder %s21, 0
      %p108 = por %p106, %p107
      %p109 = scmp.ne.s32.totalorder %s95, %s96
      %p110 = scmp.eq.s32.totalorder %s22, 1
      %p111 = por %p109, %p110
      %p113 = scmp.ne.s32.totalorder %s96, %s112
      %p114 = scmp.eq.s32.totalorder %s22, 0
      %p115 = por %p113, %p114
      %s116 = ssub.s32 %s24, %s31
      %s117 = ssub.s32 %s23, %s35
      %s118 = sor.u32 %s116, %s117
      %p119 = scmp.eq.s32.totalorder %s118, 0
      %s121 = sadd.s32 %s120, 1
      %s122 = scalar_select %p119, %s120, %s121
      %p125 = pneg %p119
      %p126 = scmp.eq.s32.totalorder %s16, 1
      %p127 = por %p125, %p126
      %p128 = scmp.ne.s32.totalorder %s120, %s123
      %p129 = scmp.eq.s32.totalorder %s16, 0
      %p130 = por %p128, %p129
      %p131 = scmp.ne.s32.totalorder %s120, %s123
      %p132 = scmp.eq.s32.totalorder %s21, 1
      %p133 = por %p131, %p132
      %p134 = scmp.ne.s32.totalorder %s123, %s124
      %p135 = scmp.eq.s32.totalorder %s21, 0
      %p136 = por %p134, %p135
      %p137 = scmp.ne.s32.totalorder %s123, %s124
      %p138 = scmp.eq.s32.totalorder %s22, 1
      %p139 = por %p137, %p138
      %p141 = scmp.ne.s32.totalorder %s124, %s140
      %p142 = scmp.eq.s32.totalorder %s22, 0
      %p143 = por %p141, %p142
      %p144 = scmp.le.s32.totalorder 1, %s16
      %p145 = scmp.lt.s32.totalorder %s16, 3
      %p146 = pnand %p144, %p145
      %p147 = pneg %p146
      // Predicated region
      $region9: #{tpu_custom_call.1} parent=5 // pred_check
        _
      $region10: #{tpu_custom_call.1} parent=5 // pred_check_branch
        %149 = sbr.rel (%p146) target = $region12
      $region11: #{tpu_custom_call.1} parent=5 // pred_region
        %s150 = ssub.s32 %s16, 1
        // Predicated region
        $region13: #{tpu_custom_call.1} parent=11 // pred_check
          %p151 = pneg %p82
        $region14: #{tpu_custom_call.1} parent=11 // pred_check_branch
          %153 = sbr.rel (%p151) target = $region16
        $region15: #{tpu_custom_call.1} parent=11 // pred_region
          %s155 = ssub.s32 128, 128
          %156 = vsyncadd [#allocation6], %s155
          %s157 = smul.addr %s25, 128
          %s158 = scalar_lea.hbm %s1, %s157
          %s160 = sshll.u32 [#allocation5], 4
          %s161 = int_to_ptr.vmem [resolvable:$true] %s160
          %163 = dma.hbm_to_vmem [thread:$0]  %s158, 128, %s161, [#allocation6]
        $region16: #{tpu_custom_call.1} parent=11 // pred_fallthru
          _
        // Predicated region
        $region17: #{tpu_custom_call.1} parent=11 // pred_check
          %p164 = pneg %p108
        $region18: #{tpu_custom_call.1} parent=11 // pred_check_branch
          %166 = sbr.rel (%p164) target = $region20
        $region19: #{tpu_custom_call.1} parent=11 // pred_region
          %s168 = ssub.s32 128, 128
          %169 = vsyncadd [#allocation6], %s168
          %s170 = smul.addr %s25, 128
          %s171 = scalar_lea.hbm %s2, %s170
          %s173 = sshll.u32 [#allocation7], 4
          %s174 = int_to_ptr.vmem [resolvable:$true] %s173
          %176 = dma.hbm_to_vmem [thread:$0]  %s171, 128, %s174, [#allocation6]
        $region20: #{tpu_custom_call.1} parent=11 // pred_fallthru
          _
      $region12: #{tpu_custom_call.1} parent=5 // pred_fallthru
        _
      %p177 = scmp.lt.s32.totalorder %s16, 2
      // Predicated region
      $region21: #{tpu_custom_call.1} parent=5 // pred_check
        %p178 = pneg %p177
      $region22: #{tpu_custom_call.1} parent=5 // pred_check_branch
        %180 = sbr.rel (%p178) target = $region24
      $region23: #{tpu_custom_call.1} parent=5 // pred_region
        // Predicated region
        $region25: #{tpu_custom_call.1} parent=23 // pred_check
          %p181 = pneg %p50
        $region26: #{tpu_custom_call.1} parent=23 // pred_check_branch
          %183 = sbr.rel (%p181) target = $region28
        $region27: #{tpu_custom_call.1} parent=23 // pred_region
          %s184 = sand.u32 %s40, 1
          %s185 = scalar_lea.sflag [#allocation3], %s184
          %s186 = sand.u32 %s40, 1
          %s187 = smul.addr %s186, 32
          %s188 = scalar_lea.vmem [#allocation2], %s187
          %s190 = ssub.s32 512, 512
          %191 = vsyncadd %s185, %s190
          %s192 = smul.addr %s23, 4
          %s193 = smul.addr %s24, 4
          %s194 = sadd.s32 %s192, %s193
          %s195 = smul.addr %s194, 128
          %s196 = scalar_lea.hbm %s0, %s195
          %s198 = sshll.u32 %s188, 4
          %s199 = int_to_ptr.vmem [resolvable:$true] %s198
          %201 = dma.hbm_to_vmem [thread:$0]  %s196, 512, %s199, %s185
        $region28: #{tpu_custom_call.1} parent=23 // pred_fallthru
          _
      $region24: #{tpu_custom_call.1} parent=5 // pred_fallthru
        _
      %p202 = scmp.le.s32.totalorder 1, %s16
      %p203 = scmp.lt.s32.totalorder %s16, 3
      %p204 = pnand %p202, %p203
      %p205 = pneg %p204
      // Predicated region
      $region29: #{tpu_custom_call.1} parent=5 // pred_check
        _
      $region30: #{tpu_custom_call.1} parent=5 // pred_check_branch
        %207 = sbr.rel (%p204) target = $region32
      $region31: #{tpu_custom_call.1} parent=5 // pred_region
        %s208 = ssub.s32 %s16, 1
        %s209 = sand.u32 %s43, 1
        %s210 = scalar_lea.sflag [#allocation3], %s209
        %s211 = sand.u32 %s43, 1
        %s212 = smul.addr %s211, 32
        %s213 = scalar_lea.vmem [#allocation2], %s212
        // Predicated region
        $region33: #{tpu_custom_call.1} parent=31 // pred_check
          %p214 = pneg %p56
        $region34: #{tpu_custom_call.1} parent=31 // pred_check_branch
          %216 = sbr.rel (%p214) target = $region36
        $region35: #{tpu_custom_call.1} parent=31 // pred_region
          %217 = dma.done %s210, 512
        $region36: #{tpu_custom_call.1} parent=31 // pred_fallthru
          _
        // Predicated region
        $region37: #{tpu_custom_call.1} parent=31 // pred_check
          %p218 = pneg %p82
        $region38: #{tpu_custom_call.1} parent=31 // pred_check_branch
          %220 = sbr.rel (%p218) target = $region40
        $region39: #{tpu_custom_call.1} parent=31 // pred_region
          %221 = dma.done [#allocation6], 128
        $region40: #{tpu_custom_call.1} parent=31 // pred_fallthru
          _
        // Predicated region
        $region41: #{tpu_custom_call.1} parent=31 // pred_check
          %p222 = pneg %p108
        $region42: #{tpu_custom_call.1} parent=31 // pred_check_branch
          %224 = sbr.rel (%p222) target = $region44
        $region43: #{tpu_custom_call.1} parent=31 // pred_region
          %225 = dma.done [#allocation6], 128
        $region44: #{tpu_custom_call.1} parent=31 // pred_fallthru
          _
        %s226 = sand.u32 %s43, 1
        %s227 = scalar_lea.sflag [#allocation3], %s226
        %s228 = sand.u32 %s43, 1
        %s229 = smul.addr %s228, 32
        %s230 = scalar_lea.vmem [#allocation2], %s229
        %p231 = pneg %p56
        %p232 = pneg %p53
        %p233 = pneg %p82
        %p234 = pneg %p79
        %p235 = pneg %p108
        %p236 = pneg %p105
        %p237 = pneg %p136
        %p238 = pneg %p133
        %s239 = sand.u32 %s123, 1
        %s240 = scalar_lea.sflag [#allocation4], %s239
        %s241 = sand.u32 %s123, 1
        %s242 = smul.addr %s241, 32
        %s243 = scalar_lea.vmem [#allocation8], %s242
        %v244 = vld [vmem:[%s213] sm:$0xff]
        %v245 = vld [vmem:[%s213 + $0x8] sm:$0xff]
        %v246 = vld [vmem:[%s213 + $0x10] sm:$0xff]
        %v247 = vld [vmem:[%s213 + $0x18] sm:$0xff]
        %v248 = vld [vmem:[#allocation5] sm:$0xff]
        %v249 = vld [vmem:[#allocation7] sm:$0xff]
        %250 = vrot.lane.b32.xlu0 %v244, 127
        %v251 = vpop.permute.xlu0 %250
        %252 = vrot.lane.b32.xlu0 %v245, 127
        %v253 = vpop.permute.xlu0 %252
        %254 = vrot.lane.b32.xlu0 %v246, 127
        %v255 = vpop.permute.xlu0 %254
        %256 = vrot.lane.b32.xlu0 %v247, 127
        %v257 = vpop.permute.xlu0 %256
        %v258 = vlaneseq
        %v259 = vand.u32 %v258, 127
        %vm260 = vcmp.lt.s32.totalorder %v259, 127
        %v261 = vsel %vm260, %v255, %v257
        %v262 = vsel %vm260, %v253, %v255
        %v263 = vsel %vm260, %v251, %v253
        %v264 = vsel %vm260, %v257, %v251
        %265 = vrot.lane.b32.xlu0 %v244, 1
        %v266 = vpop.permute.xlu0 %265
        %267 = vrot.lane.b32.xlu0 %v245, 1
        %v268 = vpop.permute.xlu0 %267
        %269 = vrot.lane.b32.xlu0 %v246, 1
        %v270 = vpop.permute.xlu0 %269
        %271 = vrot.lane.b32.xlu0 %v247, 1
        %v272 = vpop.permute.xlu0 %271
        %vm273 = vcmp.lt.s32.totalorder %v259, 1
        %v274 = vsel %vm273, %v270, %v272
        %v275 = vsel %vm273, %v268, %v270
        %v276 = vsel %vm273, %v266, %v268
        %v277 = vsel %vm273, %v272, %v266
        %v278 = vadd.s32 %v259, 128
        %v279 = vadd.s32 %v259, 256
        %v280 = vadd.s32 %v259, 384
        %vm281 = vcmp.lt.s32.totalorder %v259, 0
        %v282 = vsub.s32 0, %v259
        %v283 = vsel %vm281, %v282, %v259
        %v284 = vshrl.u32 %v283, 1
        %v285 = vand.u32 %v283, 1
        %v286 = vsub.s32 0, %v285
        %v287 = vsel %vm281, %v286, %v285
        %vm288 = vcmp.lt.s32.totalorder %v278, 0
        %v289 = vsub.s32 0, %v278
        %v290 = vsel %vm288, %v289, %v278
        %v291 = vshrl.u32 %v290, 1
        %v292 = vand.u32 %v290, 1
        %v293 = vsub.s32 0, %v292
        %v294 = vsel %vm288, %v293, %v292
        %vm295 = vcmp.lt.s32.totalorder %v279, 0
        %v296 = vsub.s32 0, %v279
        %v297 = vsel %vm295, %v296, %v279
        %v298 = vshrl.u32 %v297, 1
        %v299 = vand.u32 %v297, 1
        %v300 = vsub.s32 0, %v299
        %v301 = vsel %vm295, %v300, %v299
        %vm302 = vcmp.lt.s32.totalorder %v280, 0
        %v303 = vsub.s32 0, %v280
        %v304 = vsel %vm302, %v303, %v280
        %v305 = vshrl.u32 %v304, 1
        %v306 = vand.u32 %v304, 1
        %v307 = vsub.s32 0, %v306
        %v308 = vsel %vm302, %v307, %v306
        %vm309 = vcmp.ne.s32.totalorder %v287, 0
        %vm310 = vcmp.ne.s32.totalorder %v294, 0
        %vm311 = vcmp.ne.s32.totalorder %v301, 0
        %vm312 = vcmp.ne.s32.totalorder %v308, 0
        %vm313 = vcmp.lt.s32.totalorder %v287, 0
        %vm314 = vcmp.lt.s32.totalorder %v294, 0
        %vm315 = vcmp.lt.s32.totalorder %v301, 0
        %vm316 = vcmp.lt.s32.totalorder %v308, 0
        %vm317 = vmand %vm313, %vm309
        %vm318 = vmand %vm314, %vm310
        %vm319 = vmand %vm315, %vm311
        %vm320 = vmand %vm316, %vm312
        %v321 = vadd.s32 %v287, 2
        %v322 = vadd.s32 %v294, 2
        %v323 = vadd.s32 %v301, 2
        %v324 = vadd.s32 %v308, 2
        %v325 = vsel %vm317, %v321, %v287
        %v326 = vsel %vm318, %v322, %v294
        %v327 = vsel %vm319, %v323, %v301
        %v328 = vsel %vm320, %v324, %v308
        %vm329 = vcmp.eq.s32.totalorder %v325, 0
        %vm330 = vcmp.eq.s32.totalorder %v326, 0
        %vm331 = vcmp.eq.s32.totalorder %v327, 0
        %vm332 = vcmp.eq.s32.totalorder %v328, 0
        %v333 = vsel %vm329, %v263, %v277
        %v334 = vsel %vm330, %v262, %v276
        %v335 = vsel %vm331, %v261, %v275
        %v336 = vsel %vm332, %v264, %v274
        %v337 = vmul.f32 %v244, %v248
        %v338 = vmul.f32 %v245, %v248
        %v339 = vmul.f32 %v246, %v248
        %v340 = vmul.f32 %v247, %v248
        %v341 = vmul.f32 %v333, %v249
        %v342 = vmul.f32 %v334, %v249
        %v343 = vmul.f32 %v335, %v249
        %v344 = vmul.f32 %v336, %v249
        %v345 = vadd.f32 %v337, %v341
        %v346 = vadd.f32 %v338, %v342
        %v347 = vadd.f32 %v339, %v343
        %v348 = vadd.f32 %v340, %v344
        %349 = vst [vmem:[%s243] sm:$0xff] %v345
        %350 = vst [vmem:[%s243 + $0x8] sm:$0xff] %v346
        %351 = vst [vmem:[%s243 + $0x10] sm:$0xff] %v347
        %352 = vst [vmem:[%s243 + $0x18] sm:$0xff] %v348
        %s353 = sand.u32 %s123, 1
        %s354 = scalar_lea.sflag [#allocation4], %s353
        %s355 = sand.u32 %s123, 1
        %s356 = smul.addr %s355, 32
        %s357 = scalar_lea.vmem [#allocation8], %s356
        // Predicated region
        $region45: #{tpu_custom_call.1} parent=31 // pred_check
          %p358 = pneg %p133
        $region46: #{tpu_custom_call.1} parent=31 // pred_check_branch
          %360 = sbr.rel (%p358) target = $region48
        $region47: #{tpu_custom_call.1} parent=31 // pred_region
          %s362 = ssub.s32 512, 512
          %363 = vsyncadd %s354, %s362
          %s364 = smul.addr %s25, 4
          %s365 = smul.addr %s26, 4
          %s366 = sadd.s32 %s364, %s365
          %s367 = smul.addr %s366, 128
          %s368 = scalar_lea.hbm %s3, %s367
          %s370 = sshll.u32 %s357, 4
          %s371 = int_to_ptr.vmem [resolvable:$true] %s370
          %373 = dma.vmem_to_hbm [thread:$0]  %s371, 512, %s368, %s354
        $region48: #{tpu_custom_call.1} parent=31 // pred_fallthru
          _
      $region32: #{tpu_custom_call.1} parent=5 // pred_fallthru
        _
      %p374 = scmp.le.s32.totalorder 2, %s16
      // Predicated region
      $region49: #{tpu_custom_call.1} parent=5 // pred_check
        %p375 = pneg %p374
      $region50: #{tpu_custom_call.1} parent=5 // pred_check_branch
        %377 = sbr.rel (%p375) target = $region52
      $region51: #{tpu_custom_call.1} parent=5 // pred_region
        %s378 = ssub.s32 %s16, 2
        // Predicated region
        $region53: #{tpu_custom_call.1} parent=51 // pred_check
          %p379 = pneg %p139
        $region54: #{tpu_custom_call.1} parent=51 // pred_check_branch
          %381 = sbr.rel (%p379) target = $region56
        $region55: #{tpu_custom_call.1} parent=51 // pred_region
          %s382 = sand.u32 %s124, 1
          %s383 = scalar_lea.sflag [#allocation4], %s382
          %s384 = sand.u32 %s124, 1
          %s385 = smul.addr %s384, 32
          %s386 = scalar_lea.vmem [#allocation8], %s385
          %387 = dma.done %s383, 512
        $region56: #{tpu_custom_call.1} parent=51 // pred_fallthru
          _
      $region52: #{tpu_custom_call.1} parent=5 // pred_fallthru
        _
    $region6: #{tpu_custom_call.1} parent=1 // loop_footer
      %s20 = sadd.s32 1, %s16
    $region7: #{tpu_custom_call.1} parent=1 // loop_footer_branch
      %15 = sbr.rel target = $region3
    $region8: #{tpu_custom_call.1} parent=1 // loop_exit
      _
    %388 = vsyncpa [#allocation3], 1
    %s389 = scalar_lea.sflag [#allocation3], 1
    %390 = vsyncpa %s389, 1
    %391 = vsyncpa [#allocation6], 1
    %392 = vsyncpa [#allocation4], 1
    %s393 = scalar_lea.sflag [#allocation4], 1
    %394 = vsyncpa %s393, 1

</llo_original>
